<compile_context>
chip_gen: v7x
topology: tpu7x:2x2x1
jax: 0.10.0
libtpu: 0.0.40
codegen_flags: <defaults>
</compile_context>

<pallas_src>
import functools

import jax
import jax.numpy as jnp
from jax.experimental import pallas as pl
from jax.experimental.pallas import tpu as pltpu

# Hyperparameters implied by the module (constants undefined in the source;
# chosen small & deterministic here).
INPUT_SIZE = 16
HIDDEN_SIZE = 32
OUTPUT_SIZE = 4

# Lanes (batch columns) per grid step. 2048 keeps typical DQN batches at 1-2
# grid steps; on v7x you may pass tb = batch // 2 to guarantee both TCs work.
DEFAULT_TB = 2048

# Demo batch for the __main__ correctness run (small, per instructions).
BATCH = 64


def _round_up(n, m):
    return ((n + m - 1) // m) * m


def _mlp_kernel(x_ref,
                w1_ref, b1_ref,
                w2_ref, b2_ref,
                w3_ref, b3_ref,
                w4_ref, b4_ref,
                o_ref):
    """Fused (Linear+ReLU) x3 + final Linear, batch-on-lanes layout.

    x_ref:  (INPUT_SIZE, TB) f32      -> cast to bf16 in-kernel
    wN_ref: (out, in) bf16 (resident) ; bN_ref: (out, 1) f32 (resident)
    o_ref:  (OUTPUT_SIZE, TB) f32     -> lane-dense output store
    """
    x = x_ref[...].astype(jnp.bfloat16)                       # free VPU cast
    h = jnp.dot(w1_ref[...], x,
                preferred_element_type=jnp.float32) + b1_ref[...]
    h = jnp.maximum(h, 0.0)
    h = jnp.dot(w2_ref[...], h.astype(jnp.bfloat16),
                preferred_element_type=jnp.float32) + b2_ref[...]
    h = jnp.maximum(h, 0.0)
    h = jnp.dot(w3_ref[...], h.astype(jnp.bfloat16),
                preferred_element_type=jnp.float32) + b3_ref[...]
    h = jnp.maximum(h, 0.0)
    o_ref[...] = jnp.dot(w4_ref[...], h.astype(jnp.bfloat16),
                         preferred_element_type=jnp.float32) + b4_ref[...]


@functools.partial(jax.jit, static_argnames=("tb",))
def deep_q_net_forward(x, kparams, *, tb=DEFAULT_TB):
    """DeepQNet forward via a single batch-tiled Pallas call.

    x: (B, INPUT_SIZE) float32.
    kparams: dict from prepare_params(): wN (out, in) bf16, bN (out, 1) f32.
    Returns (B, OUTPUT_SIZE) float32.
    """
    batch = x.shape[0]

    # One-time layout flip so batch sits on the 128-lane axis (review-approved).
    xT = jnp.transpose(x)                                     # (INPUT_SIZE, B)

    b128 = _round_up(batch, 128)
    if b128 <= tb:
        # Single grid step covering the whole batch (block == full array dims,
        # so no lane-multiple constraint and no padding needed).
        tb_eff = batch
        b_pad = batch
    else:
        # >=2 steps keeps both v7x TensorCores busy; tiles are lane-multiples.
        n_steps = max(2, pl.cdiv(b128, tb))
        tb_eff = _round_up(pl.cdiv(b128, n_steps), 128)
        b_pad = _round_up(batch, tb_eff)

    if b_pad != batch:
        xT = jnp.pad(xT, ((0, 0), (0, b_pad - batch)))

    def resident(shape):
        # Same block index every grid step -> DMA'd once, stays in VMEM.
        return pl.BlockSpec(shape, lambda i: (0, 0))

    out_t = pl.pallas_call(
        _mlp_kernel,
        out_shape=jax.ShapeDtypeStruct((OUTPUT_SIZE, b_pad), jnp.float32),
        grid=(b_pad // tb_eff,),
        in_specs=[
            # x^T: batch tiled along the lane axis.
            pl.BlockSpec((INPUT_SIZE, tb_eff), lambda i: (0, i)),
            resident((HIDDEN_SIZE, INPUT_SIZE)), resident((HIDDEN_SIZE, 1)),
            resident((HIDDEN_SIZE, HIDDEN_SIZE)), resident((HIDDEN_SIZE, 1)),
            resident((HIDDEN_SIZE, HIDDEN_SIZE)), resident((HIDDEN_SIZE, 1)),
            resident((OUTPUT_SIZE, HIDDEN_SIZE)), resident((OUTPUT_SIZE, 1)),
        ],
        out_specs=pl.BlockSpec((OUTPUT_SIZE, tb_eff), lambda i: (0, i)),
        compiler_params=pltpu.CompilerParams(
            # Batch tiles are independent -> shard across v7x's 2 TensorCores.
            dimension_semantics=("parallel",),
        ),
    )(xT, kparams["w1"], kparams["b1"], kparams["w2"], kparams["b2"],
      kparams["w3"], kparams["b3"], kparams["w4"], kparams["b4"])

    return jnp.transpose(out_t)[:batch]                       # (B, OUTPUT_SIZE)


def init_params(key):
    """Deterministic f32 init mimicking nn.Linear U[-1/sqrt(fan_in), +].

    Weights stored as (out, in), biases as (out, 1) — the kernel's layout.
    """
    dims = [(INPUT_SIZE, HIDDEN_SIZE),
            (HIDDEN_SIZE, HIDDEN_SIZE),
            (HIDDEN_SIZE, HIDDEN_SIZE),
            (HIDDEN_SIZE, OUTPUT_SIZE)]
    params = {}
    for i, (fan_in, fan_out) in enumerate(dims, start=1):
        key, kw, kb = jax.random.split(key, 3)
        bound = 1.0 / jnp.sqrt(fan_in)
        params[f"w{i}"] = jax.random.uniform(
            kw, (fan_out, fan_in), jnp.float32, minval=-bound, maxval=bound)
        params[f"b{i}"] = jax.random.uniform(
            kb, (fan_out, 1), jnp.float32, minval=-bound, maxval=bound)
    return params


def prepare_params(params):
    """One-time pre-cast of weights to bf16 (done outside the forward path)."""
    out = {}
    for i in range(1, 5):
        out[f"w{i}"] = params[f"w{i}"].astype(jnp.bfloat16)
        out[f"b{i}"] = params[f"b{i}"]                        # biases stay f32
    return out


def _reference_forward_f32(x, params):
    """Pure f32 reference (matches the PyTorch module semantics)."""
    h = jnp.maximum(x @ params["w1"].T + params["b1"].T, 0.0)
    h = jnp.maximum(h @ params["w2"].T + params["b2"].T, 0.0)
    h = jnp.maximum(h @ params["w3"].T + params["b3"].T, 0.0)
    return h @ params["w4"].T + params["b4"].T


def _reference_forward_bf16(x, params):
    """Reference replicating the kernel's bf16 quantization (tight check)."""
    q = lambda a: a.astype(jnp.bfloat16)
    h = jnp.dot(q(x), q(params["w1"]).T,
                preferred_element_type=jnp.float32) + params["b1"].T
    h = jnp.maximum(h, 0.0)
    h = jnp.dot(q(h), q(params["w2"]).T,
                preferred_element_type=jnp.float32) + params["b2"].T
    h = jnp.maximum(h, 0.0)
    h = jnp.dot(q(h), q(params["w3"]).T,
                preferred_element_type=jnp.float32) + params["b3"].T
    h = jnp.maximum(h, 0.0)
    return jnp.dot(q(h), q(params["w4"]).T,
                   preferred_element_type=jnp.float32) + params["b4"].T


if __name__ == "__main__":
    key = jax.random.PRNGKey(0)
    key, kx = jax.random.split(key)
    x = jax.random.normal(kx, (BATCH, INPUT_SIZE), jnp.float32)

    params = init_params(key)          # f32 master params (PyTorch-equivalent)
    kparams = prepare_params(params)   # bf16 weights, cast once

    out = deep_q_net_forward(x, kparams)
    out = jax.block_until_ready(out)
    assert out.shape == (BATCH, OUTPUT_SIZE)

    # Tight check against a reference with identical bf16 quantization.
    ref_q = _reference_forward_bf16(x, params)
    assert jnp.allclose(out, ref_q, atol=1e-3, rtol=1e-3), \
        "mismatch vs bf16-quantized reference"

    # Loose check against the pure-f32 PyTorch-equivalent math
    # (bf16 weights/activations introduce <~1% error, fine for DQN).
    ref_f32 = _reference_forward_f32(x, params)
    assert jnp.allclose(out, ref_f32, atol=3e-2, rtol=3e-2), \
        "mismatch vs f32 reference"

    print("KERNEL_OK")
</pallas_src>

<mosaic_0001>
module attributes {stable_mosaic.version = 11 : i64} {
  func.func @_mlp_kernel(%arg0: i32, %arg1: memref<16x64xf32, #tpu.memory_space<vmem>>, %arg2: memref<32x16xbf16, #tpu.memory_space<vmem>>, %arg3: memref<32x1xf32, #tpu.memory_space<vmem>>, %arg4: memref<32x32xbf16, #tpu.memory_space<vmem>>, %arg5: memref<32x1xf32, #tpu.memory_space<vmem>>, %arg6: memref<32x32xbf16, #tpu.memory_space<vmem>>, %arg7: memref<32x1xf32, #tpu.memory_space<vmem>>, %arg8: memref<4x32xbf16, #tpu.memory_space<vmem>>, %arg9: memref<4x1xf32, #tpu.memory_space<vmem>>, %arg10: memref<4x64xf32, #tpu.memory_space<vmem>>) attributes {dimension_semantics = [#tpu.dimension_semantics<parallel>], iteration_bounds = array<i64: 1>, scalar_prefetch = 0 : i64, scratch_operands = 0 : i64, tpu.core_type = #tpu.core_type<tc>, window_params = [{transform_indices = @transform_0, window_bounds = array<i64: 16, 64>}, {pipeline_mode = #tpu.pipeline_mode<synchronous>, transform_indices = @transform_1, window_bounds = array<i64: 32, 16>}, {pipeline_mode = #tpu.pipeline_mode<synchronous>, transform_indices = @transform_2, window_bounds = array<i64: 32, 1>}, {pipeline_mode = #tpu.pipeline_mode<synchronous>, transform_indices = @transform_3, window_bounds = array<i64: 32, 32>}, {pipeline_mode = #tpu.pipeline_mode<synchronous>, transform_indices = @transform_4, window_bounds = array<i64: 32, 1>}, {pipeline_mode = #tpu.pipeline_mode<synchronous>, transform_indices = @transform_5, window_bounds = array<i64: 32, 32>}, {pipeline_mode = #tpu.pipeline_mode<synchronous>, transform_indices = @transform_6, window_bounds = array<i64: 32, 1>}, {pipeline_mode = #tpu.pipeline_mode<synchronous>, transform_indices = @transform_7, window_bounds = array<i64: 4, 32>}, {pipeline_mode = #tpu.pipeline_mode<synchronous>, transform_indices = @transform_8, window_bounds = array<i64: 4, 1>}, {transform_indices = @transform_9, window_bounds = array<i64: 4, 64>}]} {
    %c0 = arith.constant 0 : index
    %c0_0 = arith.constant 0 : index
    %0 = vector.load %arg1[%c0, %c0_0] : memref<16x64xf32, #tpu.memory_space<vmem>>, vector<16x64xf32>
    %1 = arith.truncf %0 : vector<16x64xf32> to vector<16x64xbf16>
    %c0_1 = arith.constant 0 : index
    %c0_2 = arith.constant 0 : index
    %2 = vector.load %arg2[%c0_1, %c0_2] : memref<32x16xbf16, #tpu.memory_space<vmem>>, vector<32x16xbf16>
    %cst = arith.constant dense<0.000000e+00> : vector<32x64xf32>
    %3 = tpu.matmul %2, %1, %cst {dimension_numbers = #tpu.dot_dimension_numbers<[1], [0], [0], [1], [0, 0, 1, 1], [], []>} : vector<32x16xbf16>, vector<16x64xbf16>, vector<32x64xf32> -> vector<32x64xf32>
    %c0_3 = arith.constant 0 : index
    %c0_4 = arith.constant 0 : index
    %4 = vector.load %arg3[%c0_3, %c0_4] : memref<32x1xf32, #tpu.memory_space<vmem>>, vector<32x1xf32>
    %5 = vector.broadcast %4 : vector<32x1xf32> to vector<32x64xf32>
    %6 = arith.addf %3, %5 : vector<32x64xf32>
    %cst_5 = arith.constant 0.000000e+00 : f32
    %7 = vector.broadcast %cst_5 : f32 to vector<32x64xf32>
    %8 = arith.maximumf %6, %7 : vector<32x64xf32>
    %c0_6 = arith.constant 0 : index
    %c0_7 = arith.constant 0 : index
    %9 = vector.load %arg4[%c0_6, %c0_7] : memref<32x32xbf16, #tpu.memory_space<vmem>>, vector<32x32xbf16>
    %10 = arith.truncf %8 : vector<32x64xf32> to vector<32x64xbf16>
    %cst_8 = arith.constant dense<0.000000e+00> : vector<32x64xf32>
    %11 = tpu.matmul %9, %10, %cst_8 {dimension_numbers = #tpu.dot_dimension_numbers<[1], [0], [0], [1], [0, 0, 1, 1], [], []>} : vector<32x32xbf16>, vector<32x64xbf16>, vector<32x64xf32> -> vector<32x64xf32>
    %c0_9 = arith.constant 0 : index
    %c0_10 = arith.constant 0 : index
    %12 = vector.load %arg5[%c0_9, %c0_10] : memref<32x1xf32, #tpu.memory_space<vmem>>, vector<32x1xf32>
    %13 = vector.broadcast %12 : vector<32x1xf32> to vector<32x64xf32>
    %14 = arith.addf %11, %13 : vector<32x64xf32>
    %cst_11 = arith.constant 0.000000e+00 : f32
    %15 = vector.broadcast %cst_11 : f32 to vector<32x64xf32>
    %16 = arith.maximumf %14, %15 : vector<32x64xf32>
    %c0_12 = arith.constant 0 : index
    %c0_13 = arith.constant 0 : index
    %17 = vector.load %arg6[%c0_12, %c0_13] : memref<32x32xbf16, #tpu.memory_space<vmem>>, vector<32x32xbf16>
    %18 = arith.truncf %16 : vector<32x64xf32> to vector<32x64xbf16>
    %cst_14 = arith.constant dense<0.000000e+00> : vector<32x64xf32>
    %19 = tpu.matmul %17, %18, %cst_14 {dimension_numbers = #tpu.dot_dimension_numbers<[1], [0], [0], [1], [0, 0, 1, 1], [], []>} : vector<32x32xbf16>, vector<32x64xbf16>, vector<32x64xf32> -> vector<32x64xf32>
    %c0_15 = arith.constant 0 : index
    %c0_16 = arith.constant 0 : index
    %20 = vector.load %arg7[%c0_15, %c0_16] : memref<32x1xf32, #tpu.memory_space<vmem>>, vector<32x1xf32>
    %21 = vector.broadcast %20 : vector<32x1xf32> to vector<32x64xf32>
    %22 = arith.addf %19, %21 : vector<32x64xf32>
    %cst_17 = arith.constant 0.000000e+00 : f32
    %23 = vector.broadcast %cst_17 : f32 to vector<32x64xf32>
    %24 = arith.maximumf %22, %23 : vector<32x64xf32>
    %c0_18 = arith.constant 0 : index
    %c0_19 = arith.constant 0 : index
    %25 = vector.load %arg8[%c0_18, %c0_19] : memref<4x32xbf16, #tpu.memory_space<vmem>>, vector<4x32xbf16>
    %26 = arith.truncf %24 : vector<32x64xf32> to vector<32x64xbf16>
    %cst_20 = arith.constant dense<0.000000e+00> : vector<4x64xf32>
    %27 = tpu.matmul %25, %26, %cst_20 {dimension_numbers = #tpu.dot_dimension_numbers<[1], [0], [0], [1], [0, 0, 1, 1], [], []>} : vector<4x32xbf16>, vector<32x64xbf16>, vector<4x64xf32> -> vector<4x64xf32>
    %c0_21 = arith.constant 0 : index
    %c0_22 = arith.constant 0 : index
    %28 = vector.load %arg9[%c0_21, %c0_22] : memref<4x1xf32, #tpu.memory_space<vmem>>, vector<4x1xf32>
    %29 = vector.broadcast %28 : vector<4x1xf32> to vector<4x64xf32>
    %30 = arith.addf %27, %29 : vector<4x64xf32>
    %c0_23 = arith.constant 0 : index
    %c0_24 = arith.constant 0 : index
    %31 = vector.load %arg10[%c0_23, %c0_24] : memref<4x64xf32, #tpu.memory_space<vmem>>, vector<4x64xf32>
    tpu.vector_store %arg10[%c0_23, %c0_24], %30 {strides = array<i32>} : memref<4x64xf32, #tpu.memory_space<vmem>>, vector<4x64xf32>,
    return
  }
  func.func @transform_0(%arg0: i32) -> (i32, i32) {
    %c0_i32 = arith.constant 0 : i32
    %c0_i32_0 = arith.constant 0 : i32
    return %c0_i32, %arg0 : i32, i32
  }
  func.func @transform_1(%arg0: i32) -> (i32, i32) {
    %c0_i32 = arith.constant 0 : i32
    %c0_i32_0 = arith.constant 0 : i32
    %c0_i32_1 = arith.constant 0 : i32
    return %c0_i32, %c0_i32_0 : i32, i32
  }
  func.func @transform_2(%arg0: i32) -> (i32, i32) {
    %c0_i32 = arith.constant 0 : i32
    %c0_i32_0 = arith.constant 0 : i32
    %c0_i32_1 = arith.constant 0 : i32
    return %c0_i32, %c0_i32_0 : i32, i32
  }
  func.func @transform_3(%arg0: i32) -> (i32, i32) {
    %c0_i32 = arith.constant 0 : i32
    %c0_i32_0 = arith.constant 0 : i32
    %c0_i32_1 = arith.constant 0 : i32
    return %c0_i32, %c0_i32_0 : i32, i32
  }
  func.func @transform_4(%arg0: i32) -> (i32, i32) {
    %c0_i32 = arith.constant 0 : i32
    %c0_i32_0 = arith.constant 0 : i32
    %c0_i32_1 = arith.constant 0 : i32
    return %c0_i32, %c0_i32_0 : i32, i32
  }
  func.func @transform_5(%arg0: i32) -> (i32, i32) {
    %c0_i32 = arith.constant 0 : i32
    %c0_i32_0 = arith.constant 0 : i32
    %c0_i32_1 = arith.constant 0 : i32
    return %c0_i32, %c0_i32_0 : i32, i32
  }
  func.func @transform_6(%arg0: i32) -> (i32, i32) {
    %c0_i32 = arith.constant 0 : i32
    %c0_i32_0 = arith.constant 0 : i32
    %c0_i32_1 = arith.constant 0 : i32
    return %c0_i32, %c0_i32_0 : i32, i32
  }
  func.func @transform_7(%arg0: i32) -> (i32, i32) {
    %c0_i32 = arith.constant 0 : i32
    %c0_i32_0 = arith.constant 0 : i32
    %c0_i32_1 = arith.constant 0 : i32
    return %c0_i32, %c0_i32_0 : i32, i32
  }
  func.func @transform_8(%arg0: i32) -> (i32, i32) {
    %c0_i32 = arith.constant 0 : i32
    %c0_i32_0 = arith.constant 0 : i32
    %c0_i32_1 = arith.constant 0 : i32
    return %c0_i32, %c0_i32_0 : i32, i32
  }
  func.func @transform_9(%arg0: i32) -> (i32, i32) {
    %c0_i32 = arith.constant 0 : i32
    %c0_i32_0 = arith.constant 0 : i32
    return %c0_i32, %arg0 : i32, i32
  }
}

</mosaic_0001>

<llo_original>
// kernel: deep_q_net_forward.1
$region0: #{deep_q_net_forward.1}
  #allocation0 [shape = 'u32[]', space=smem, size = 0x4, offset = 0x4, fixed_abs, tag = 'smem constant byte address 0x4 - core index']
  #allocation1 [shape = 'u32[144,128]{1,0:T(1,128)}', space=vmem, size = 0x12000, scoped, tag = 'internal scratch']
  %s0 = inlined_call_operand.vmem [shape: f32[16,64], index: 0, kind: input, shape index: {}]
  %s1 = inlined_call_operand.vmem [shape: bf16[32,16], index: 1, kind: input, shape index: {}]
  %s2 = inlined_call_operand.vmem [shape: f32[32,1], index: 2, kind: input, shape index: {}]
  %s3 = inlined_call_operand.vmem [shape: bf16[32,32], index: 3, kind: input, shape index: {}]
  %s4 = inlined_call_operand.vmem [shape: f32[32,1], index: 4, kind: input, shape index: {}]
  %s5 = inlined_call_operand.vmem [shape: bf16[32,32], index: 5, kind: input, shape index: {}]
  %s6 = inlined_call_operand.vmem [shape: f32[32,1], index: 6, kind: input, shape index: {}]
  %s7 = inlined_call_operand.vmem [shape: bf16[4,32], index: 7, kind: input, shape index: {}]
  %s8 = inlined_call_operand.vmem [shape: f32[4,1], index: 8, kind: input, shape index: {}]
  %s9 = inlined_call_operand.hbm [shape: f32[4,64], index: 9, kind: output, shape index: {}]
  %s10 = sld [smem:[#allocation0]]
  $region46: #{deep_q_net_forward.1} parent=0
    _
  %s12 = ssub.s32 1, %s10
  %s13 = scalar_select 0, %s12, %s10
  $region1: #{deep_q_net_forward.1} parent=0
    #allocation2 [shape = 'u8[2048]{0}', space=vmem, size = 0x800, scoped, tag = 'output window, operand 0, single buffered']
    #allocation3 [shape = 's32[1]{0}', space=sflag, size = 0x4, scoped, tag = 'scoped memory for deep_q_net_forward.1']
    %14 = vsyncpa [#allocation3], 0
    // Predicated region
    $region2: #{deep_q_net_forward.1} parent=1 // pred_check
      _
    $region3: #{deep_q_net_forward.1} parent=1 // pred_check_branch
      %16 = sbr.rel (0) target = $region5
    $region4: #{deep_q_net_forward.1} parent=1 // pred_region
      _
    $region5: #{deep_q_net_forward.1} parent=1 // pred_fallthru
      _
    // Predicated region
    $region6: #{deep_q_net_forward.1} parent=1 // pred_check
      _
    $region7: #{deep_q_net_forward.1} parent=1 // pred_check_branch
      %18 = sbr.rel (0) target = $region9
    $region8: #{deep_q_net_forward.1} parent=1 // pred_region
      _
    $region9: #{deep_q_net_forward.1} parent=1 // pred_fallthru
      _
    // Predicated region
    $region10: #{deep_q_net_forward.1} parent=1 // pred_check
      _
    $region11: #{deep_q_net_forward.1} parent=1 // pred_check_branch
      %20 = sbr.rel (0) target = $region13
    $region12: #{deep_q_net_forward.1} parent=1 // pred_region
      _
    $region13: #{deep_q_net_forward.1} parent=1 // pred_fallthru
      _
    // Predicated region
    $region14: #{deep_q_net_forward.1} parent=1 // pred_check
      _
    $region15: #{deep_q_net_forward.1} parent=1 // pred_check_branch
      %22 = sbr.rel (0) target = $region17
    $region16: #{deep_q_net_forward.1} parent=1 // pred_region
      _
    $region17: #{deep_q_net_forward.1} parent=1 // pred_fallthru
      _
    // Predicated region
    $region18: #{deep_q_net_forward.1} parent=1 // pred_check
      _
    $region19: #{deep_q_net_forward.1} parent=1 // pred_check_branch
      %24 = sbr.rel (0) target = $region21
    $region20: #{deep_q_net_forward.1} parent=1 // pred_region
      _
    $region21: #{deep_q_net_forward.1} parent=1 // pred_fallthru
      _
    // Predicated region
    $region22: #{deep_q_net_forward.1} parent=1 // pred_check
      _
    $region23: #{deep_q_net_forward.1} parent=1 // pred_check_branch
      %26 = sbr.rel (0) target = $region25
    $region24: #{deep_q_net_forward.1} parent=1 // pred_region
      _
    $region25: #{deep_q_net_forward.1} parent=1 // pred_fallthru
      _
    // Predicated region
    $region26: #{deep_q_net_forward.1} parent=1 // pred_check
      _
    $region27: #{deep_q_net_forward.1} parent=1 // pred_check_branch
      %28 = sbr.rel (0) target = $region29
    $region28: #{deep_q_net_forward.1} parent=1 // pred_region
      _
    $region29: #{deep_q_net_forward.1} parent=1 // pred_fallthru
      _
    // Predicated region
    $region30: #{deep_q_net_forward.1} parent=1 // pred_check
      _
    $region31: #{deep_q_net_forward.1} parent=1 // pred_check_branch
      %30 = sbr.rel (0) target = $region33
    $region32: #{deep_q_net_forward.1} parent=1 // pred_region
      _
    $region33: #{deep_q_net_forward.1} parent=1 // pred_fallthru
      _
    // Predicated region
    $region34: #{deep_q_net_forward.1} parent=1 // pred_check
      _
    $region35: #{deep_q_net_forward.1} parent=1 // pred_check_branch
      %32 = sbr.rel (0) target = $region37
    $region36: #{deep_q_net_forward.1} parent=1 // pred_region
      _
    $region37: #{deep_q_net_forward.1} parent=1 // pred_fallthru
      _
    %v34 = vld [vmem:[%s0] sm:$0xff]
    %v35 = vld [vmem:[%s0 + $0x8] sm:$0xff]
    %v36 = vpack.c.bf16 %v35, %v34
    %v37 = vld [vmem:[%s1] sm:$0xf]
    %v38 = vld [vmem:[%s1 + $0x4] sm:$0xf]
    %v39 = vld [vmem:[%s1 + $0x8] sm:$0xf]
    %v40 = vld [vmem:[%s1 + $0xc] sm:$0xf]
    %v41 = vld [vmem:[%s2] sm:$0xff]
    %v42 = vld [vmem:[%s2 + $0x8] sm:$0xff]
    %v43 = vld [vmem:[%s2 + $0x10] sm:$0xff]
    %v44 = vld [vmem:[%s2 + $0x18] sm:$0xff]
    %46 = vset.pattern.permute.xlu0 0
    %47 = vperm.xlu0 %46, %v41
    %v48 = vpop.permute.xlu0 %47
    %51 = vset.pattern.permute.xlu0 0
    %52 = vperm.xlu0 %51, %v42
    %v53 = vpop.permute.xlu0 %52
    %56 = vset.pattern.permute.xlu0 0
    %57 = vperm.xlu0 %56, %v43
    %v58 = vpop.permute.xlu0 %57
    %61 = vset.pattern.permute.xlu0 0
    %62 = vperm.xlu0 %61, %v44
    %v63 = vpop.permute.xlu0 %62
    %v69 = vunpack.c.l.b16 %v37
    %v70 = vunpack.c.l.b16 %v38
    %v71 = vunpack.c.l.b16 %v39
    %v72 = vunpack.c.l.b16 %v40
    %v73 = vpack.c.b16 %v70, %v69
    %v74 = vpack.c.b16 %v72, %v71
    %vm75 = vcmask 130048
    %v77 = vsel %vm75, %v73, 0
    %v80 = vsel %vm75, %v74, 0
    %82 = vmatprep.subr.bf16.mxu0 0
    %83 = vmatpush1.bf16.msra.mxu0 %v36
    %84 = vmatprep.subr.bf16.mxu0 0
    %85 = vmatpush1.bf16.msra.mxu0 0
    %86 = vmatprep.subr.bf16.mxu0 0
    %87 = vmatpush1.bf16.msra.mxu0 0
    %88 = vmatprep.subr.bf16.mxu0 0
    %89 = vmatpush1.bf16.msra.mxu0 0
    %90 = vmatprep.subr.bf16.mxu0 0
    %91 = vmatpush1.bf16.msra.mxu0 0
    %92 = vmatprep.subr.bf16.mxu0 0
    %93 = vmatpush1.bf16.msra.mxu0 0
    %94 = vmatprep.subr.bf16.mxu0 0
    %95 = vmatpush1.bf16.msra.mxu0 0
    %96 = vmatprep.subr.bf16.mxu0 0
    %97 = vmatpush1.bf16.msra.mxu0 0
    %98 = vmatprep.subr.bf16.mxu0 0
    %99 = vmatpush1.bf16.msra.mxu0 0
    %100 = vmatprep.subr.bf16.mxu0 0
    %101 = vmatpush1.bf16.msra.mxu0 0
    %102 = vmatprep.subr.bf16.mxu0 0
    %103 = vmatpush1.bf16.msra.mxu0 0
    %104 = vmatprep.subr.bf16.mxu0 0
    %105 = vmatpush1.bf16.msra.mxu0 0
    %106 = vmatprep.subr.bf16.mxu0 0
    %107 = vmatpush1.bf16.msra.mxu0 0
    %108 = vmatprep.subr.bf16.mxu0 0
    %109 = vmatpush1.bf16.msra.mxu0 0
    %110 = vmatprep.subr.bf16.mxu0 0
    %111 = vmatpush1.bf16.msra.mxu0 0
    %112 = vmatprep.subr.bf16.mxu0 0
    %113 = vmatpush1.bf16.msra.mxu0 0
    %114 = vmatprep.mubr.bf16.mxu0 0
    %115 = vmatmul.mubr.bf16.gmra.mrb[0].mxu0 %v77
    %v116 = vpop.f32.mrb[0].mxu0
    %v117 = vadd.f32 %v48, %v116
    %v118 = vpop.f32.mrb[0].mxu0
    %v119 = vpop.f32.mrb[0].mxu0
    %v120 = vadd.f32 %v53, %v119
    %v121 = vpop.f32.mrb[0].mxu0
    %122 = vmatprep.mubr.bf16.mxu0 0
    %123 = vmatmul.mubr.bf16.gmra.mrb[0].mxu0 %v80
    %v124 = vpop.f32.mrb[0].mxu0
    %v125 = vadd.f32 %v58, %v124
    %v126 = vpop.f32.mrb[0].mxu0
    %v127 = vpop.f32.mrb[0].mxu0
    %v128 = vadd.f32 %v63, %v127
    %v129 = vpop.f32.mrb[0].mxu0
    %130 = vdwg.mxu0
    %v131 = vmax.f32 %v117, 0.0
    %v132 = vmax.f32 %v120, 0.0
    %v133 = vmax.f32 %v125, 0.0
    %v134 = vmax.f32 %v128, 0.0
    %v135 = vld [vmem:[%s3] sm:$0xf]
    %v136 = vld [vmem:[%s3 + $0x4] sm:$0xf]
    %v137 = vld [vmem:[%s3 + $0x8] sm:$0xf]
    %v138 = vld [vmem:[%s3 + $0xc] sm:$0xf]
    %v139 = vpack.c.bf16 %v132, %v131
    %v140 = vpack.c.bf16 %v134, %v133
    %v141 = vld [vmem:[%s4] sm:$0xff]
    %v142 = vld [vmem:[%s4 + $0x8] sm:$0xff]
    %v143 = vld [vmem:[%s4 + $0x10] sm:$0xff]
    %v144 = vld [vmem:[%s4 + $0x18] sm:$0xff]
    %146 = vset.pattern.permute.xlu0 0
    %147 = vperm.xlu0 %146, %v141
    %v148 = vpop.permute.xlu0 %147
    %151 = vset.pattern.permute.xlu0 0
    %152 = vperm.xlu0 %151, %v142
    %v153 = vpop.permute.xlu0 %152
    %156 = vset.pattern.permute.xlu0 0
    %157 = vperm.xlu0 %156, %v143
    %v158 = vpop.permute.xlu0 %157
    %161 = vset.pattern.permute.xlu0 0
    %162 = vperm.xlu0 %161, %v144
    %v163 = vpop.permute.xlu0 %162
    %v169 = vunpack.c.l.b16 %v135
    %v170 = vunpack.c.l.b16 %v136
    %v171 = vunpack.c.l.b16 %v137
    %v172 = vunpack.c.l.b16 %v138
    %v173 = vpack.c.b16 %v170, %v169
    %v174 = vpack.c.b16 %v172, %v171
    %vm175 = vcmask 261120
    %v177 = vsel %vm175, %v173, 0
    %v180 = vsel %vm175, %v174, 0
    %182 = vmatprep.subr.bf16.mxu0 0
    %183 = vmatpush1.bf16.msra.mxu0 %v139
    %184 = vmatprep.subr.bf16.mxu0 0
    %185 = vmatpush1.bf16.msra.mxu0 %v140
    %186 = vmatprep.subr.bf16.mxu0 0
    %187 = vmatpush1.bf16.msra.mxu0 0
    %188 = vmatprep.subr.bf16.mxu0 0
    %189 = vmatpush1.bf16.msra.mxu0 0
    %190 = vmatprep.subr.bf16.mxu0 0
    %191 = vmatpush1.bf16.msra.mxu0 0
    %192 = vmatprep.subr.bf16.mxu0 0
    %193 = vmatpush1.bf16.msra.mxu0 0
    %194 = vmatprep.subr.bf16.mxu0 0
    %195 = vmatpush1.bf16.msra.mxu0 0
    %196 = vmatprep.subr.bf16.mxu0 0
    %197 = vmatpush1.bf16.msra.mxu0 0
    %198 = vmatprep.subr.bf16.mxu0 0
    %199 = vmatpush1.bf16.msra.mxu0 0
    %200 = vmatprep.subr.bf16.mxu0 0
    %201 = vmatpush1.bf16.msra.mxu0 0
    %202 = vmatprep.subr.bf16.mxu0 0
    %203 = vmatpush1.bf16.msra.mxu0 0
    %204 = vmatprep.subr.bf16.mxu0 0
    %205 = vmatpush1.bf16.msra.mxu0 0
    %206 = vmatprep.subr.bf16.mxu0 0
    %207 = vmatpush1.bf16.msra.mxu0 0
    %208 = vmatprep.subr.bf16.mxu0 0
    %209 = vmatpush1.bf16.msra.mxu0 0
    %210 = vmatprep.subr.bf16.mxu0 0
    %211 = vmatpush1.bf16.msra.mxu0 0
    %212 = vmatprep.subr.bf16.mxu0 0
    %213 = vmatpush1.bf16.msra.mxu0 0
    %214 = vmatprep.mubr.bf16.mxu0 0
    %215 = vmatmul.mubr.bf16.gmra.mrb[0].mxu0 %v177
    %v216 = vpop.f32.mrb[0].mxu0
    %v217 = vadd.f32 %v148, %v216
    %v218 = vpop.f32.mrb[0].mxu0
    %v219 = vpop.f32.mrb[0].mxu0
    %v220 = vadd.f32 %v153, %v219
    %v221 = vpop.f32.mrb[0].mxu0
    %222 = vmatprep.mubr.bf16.mxu0 0
    %223 = vmatmul.mubr.bf16.gmra.mrb[0].mxu0 %v180
    %v224 = vpop.f32.mrb[0].mxu0
    %v225 = vadd.f32 %v158, %v224
    %v226 = vpop.f32.mrb[0].mxu0
    %v227 = vpop.f32.mrb[0].mxu0
    %v228 = vadd.f32 %v163, %v227
    %v229 = vpop.f32.mrb[0].mxu0
    %230 = vdwg.mxu0
    %v231 = vmax.f32 %v217, 0.0
    %v232 = vmax.f32 %v220, 0.0
    %v233 = vmax.f32 %v225, 0.0
    %v234 = vmax.f32 %v228, 0.0
    %v235 = vld [vmem:[%s5] sm:$0xf]
    %v236 = vld [vmem:[%s5 + $0x4] sm:$0xf]
    %v237 = vld [vmem:[%s5 + $0x8] sm:$0xf]
    %v238 = vld [vmem:[%s5 + $0xc] sm:$0xf]
    %v239 = vpack.c.bf16 %v232, %v231
    %v240 = vpack.c.bf16 %v234, %v233
    %v241 = vld [vmem:[%s6] sm:$0xff]
    %v242 = vld [vmem:[%s6 + $0x8] sm:$0xff]
    %v243 = vld [vmem:[%s6 + $0x10] sm:$0xff]
    %v244 = vld [vmem:[%s6 + $0x18] sm:$0xff]
    %246 = vset.pattern.permute.xlu0 0
    %247 = vperm.xlu0 %246, %v241
    %v248 = vpop.permute.xlu0 %247
    %251 = vset.pattern.permute.xlu0 0
    %252 = vperm.xlu0 %251, %v242
    %v253 = vpop.permute.xlu0 %252
    %256 = vset.pattern.permute.xlu0 0
    %257 = vperm.xlu0 %256, %v243
    %v258 = vpop.permute.xlu0 %257
    %261 = vset.pattern.permute.xlu0 0
    %262 = vperm.xlu0 %261, %v244
    %v263 = vpop.permute.xlu0 %262
    %v269 = vunpack.c.l.b16 %v235
    %v270 = vunpack.c.l.b16 %v236
    %v271 = vunpack.c.l.b16 %v237
    %v272 = vunpack.c.l.b16 %v238
    %v273 = vpack.c.b16 %v270, %v269
    %v274 = vpack.c.b16 %v272, %v271
    %v276 = vsel %vm175, %v273, 0
    %v279 = vsel %vm175, %v274, 0
    %281 = vmatprep.subr.bf16.mxu0 0
    %282 = vmatpush1.bf16.msra.mxu0 %v239
    %283 = vmatprep.subr.bf16.mxu0 0
    %284 = vmatpush1.bf16.msra.mxu0 %v240
    %285 = vmatprep.subr.bf16.mxu0 0
    %286 = vmatpush1.bf16.msra.mxu0 0
    %287 = vmatprep.subr.bf16.mxu0 0
    %288 = vmatpush1.bf16.msra.mxu0 0
    %289 = vmatprep.subr.bf16.mxu0 0
    %290 = vmatpush1.bf16.msra.mxu0 0
    %291 = vmatprep.subr.bf16.mxu0 0
    %292 = vmatpush1.bf16.msra.mxu0 0
    %293 = vmatprep.subr.bf16.mxu0 0
    %294 = vmatpush1.bf16.msra.mxu0 0
    %295 = vmatprep.subr.bf16.mxu0 0
    %296 = vmatpush1.bf16.msra.mxu0 0
    %297 = vmatprep.subr.bf16.mxu0 0
    %298 = vmatpush1.bf16.msra.mxu0 0
    %299 = vmatprep.subr.bf16.mxu0 0
    %300 = vmatpush1.bf16.msra.mxu0 0
    %301 = vmatprep.subr.bf16.mxu0 0
    %302 = vmatpush1.bf16.msra.mxu0 0
    %303 = vmatprep.subr.bf16.mxu0 0
    %304 = vmatpush1.bf16.msra.mxu0 0
    %305 = vmatprep.subr.bf16.mxu0 0
    %306 = vmatpush1.bf16.msra.mxu0 0
    %307 = vmatprep.subr.bf16.mxu0 0
    %308 = vmatpush1.bf16.msra.mxu0 0
    %309 = vmatprep.subr.bf16.mxu0 0
    %310 = vmatpush1.bf16.msra.mxu0 0
    %311 = vmatprep.subr.bf16.mxu0 0
    %312 = vmatpush1.bf16.msra.mxu0 0
    %313 = vmatprep.mubr.bf16.mxu0 0
    %314 = vmatmul.mubr.bf16.gmra.mrb[0].mxu0 %v276
    %v315 = vpop.f32.mrb[0].mxu0
    %v316 = vadd.f32 %v248, %v315
    %v317 = vpop.f32.mrb[0].mxu0
    %v318 = vpop.f32.mrb[0].mxu0
    %v319 = vadd.f32 %v253, %v318
    %v320 = vpop.f32.mrb[0].mxu0
    %321 = vmatprep.mubr.bf16.mxu0 0
    %322 = vmatmul.mubr.bf16.gmra.mrb[0].mxu0 %v279
    %v323 = vpop.f32.mrb[0].mxu0
    %v324 = vadd.f32 %v258, %v323
    %v325 = vpop.f32.mrb[0].mxu0
    %v326 = vpop.f32.mrb[0].mxu0
    %v327 = vadd.f32 %v263, %v326
    %v328 = vpop.f32.mrb[0].mxu0
    %329 = vdwg.mxu0
    %v330 = vmax.f32 %v316, 0.0
    %v331 = vmax.f32 %v319, 0.0
    %v332 = vmax.f32 %v324, 0.0
    %v333 = vmax.f32 %v327, 0.0
    %v334 = vld [vmem:[%s7] sm:$0x3]
    %v335 = vpack.c.bf16 %v331, %v330
    %v336 = vpack.c.bf16 %v333, %v332
    %v337 = vld [vmem:[%s8] sm:$0xf]
    %339 = vset.pattern.permute.xlu0 0
    %340 = vperm.xlu0 %339, %v337
    %v341 = vpop.permute.xlu0 %340
    %v344 = vsel %vm175, %v334, 0
    %346 = vmatprep.subr.bf16.mxu0 0
    %347 = vmatpush1.bf16.msra.mxu0 %v335
    %348 = vmatprep.subr.bf16.mxu0 0
    %349 = vmatpush1.bf16.msra.mxu0 %v336
    %350 = vmatprep.subr.bf16.mxu0 0
    %351 = vmatpush1.bf16.msra.mxu0 0
    %352 = vmatprep.subr.bf16.mxu0 0
    %353 = vmatpush1.bf16.msra.mxu0 0
    %354 = vmatprep.subr.bf16.mxu0 0
    %355 = vmatpush1.bf16.msra.mxu0 0
    %356 = vmatprep.subr.bf16.mxu0 0
    %357 = vmatpush1.bf16.msra.mxu0 0
    %358 = vmatprep.subr.bf16.mxu0 0
    %359 = vmatpush1.bf16.msra.mxu0 0
    %360 = vmatprep.subr.bf16.mxu0 0
    %361 = vmatpush1.bf16.msra.mxu0 0
    %362 = vmatprep.subr.bf16.mxu0 0
    %363 = vmatpush1.bf16.msra.mxu0 0
    %364 = vmatprep.subr.bf16.mxu0 0
    %365 = vmatpush1.bf16.msra.mxu0 0
    %366 = vmatprep.subr.bf16.mxu0 0
    %367 = vmatpush1.bf16.msra.mxu0 0
    %368 = vmatprep.subr.bf16.mxu0 0
    %369 = vmatpush1.bf16.msra.mxu0 0
    %370 = vmatprep.subr.bf16.mxu0 0
    %371 = vmatpush1.bf16.msra.mxu0 0
    %372 = vmatprep.subr.bf16.mxu0 0
    %373 = vmatpush1.bf16.msra.mxu0 0
    %374 = vmatprep.subr.bf16.mxu0 0
    %375 = vmatpush1.bf16.msra.mxu0 0
    %376 = vmatprep.subr.bf16.mxu0 0
    %377 = vmatpush1.bf16.msra.mxu0 0
    %378 = vmatprep.mubr.bf16.mxu0 0
    %379 = vmatmul.mubr.bf16.gmra.mrb[0].mxu0 %v344
    %v380 = vpop.f32.mrb[0].mxu0
    %v381 = vadd.f32 %v341, %v380
    %v382 = vpop.f32.mrb[0].mxu0
    %v383 = vpop.f32.mrb[0].mxu0
    %v384 = vpop.f32.mrb[0].mxu0
    %385 = vdwg.mxu0
    %vm386 = vcmask 519168
    %387 = vst.msk [vmem:[#allocation2] sm:$0xf] %vm386, %v381
    // Predicated region
    $region38: #{deep_q_net_forward.1} parent=1 // pred_check
      _
    $region39: #{deep_q_net_forward.1} parent=1 // pred_check_branch
      %389 = sbr.rel (0) target = $region41
    $region40: #{deep_q_net_forward.1} parent=1 // pred_region
      %s391 = ssub.s32 64, 64
      %392 = vsyncadd [#allocation3], %s391
      %s394 = sshll.u32 [#allocation2], 4
      %s395 = int_to_ptr.vmem [resolvable:$true] %s394
      %397 = dma.vmem_to_hbm [thread:$0]  %s395, 64, %s9, [#allocation3]
    $region41: #{deep_q_net_forward.1} parent=1 // pred_fallthru
      _
    // Predicated region
    $region42: #{deep_q_net_forward.1} parent=1 // pred_check
      _
    $region43: #{deep_q_net_forward.1} parent=1 // pred_check_branch
      %399 = sbr.rel (0) target = $region45
    $region44: #{deep_q_net_forward.1} parent=1 // pred_region
      %400 = dma.done [#allocation3], 64
    $region45: #{deep_q_net_forward.1} parent=1 // pred_fallthru
      _
    %401 = vsyncpa [#allocation3], 1

</llo_original>
